<compile_context>
chip_gen: v7x
topology: tpu7x:2x2x1
jax: 0.10.0
libtpu: 0.0.40
codegen_flags: <defaults>
</compile_context>

<pallas_src>
import functools

import jax
import jax.numpy as jnp
from jax.experimental import pallas as pl
from jax.experimental.pallas import tpu as pltpu


_ROWS_PER_STEP = 8                  # one full sublane tile of output per step
_VMEM_TABLE_BYTES_LIMIT = 4 << 20   # both tables resident in VMEM below this
                                    # (conservative vs. v7x 32 MiB scoped VMEM,
                                    #  accounting for Pallas double-buffering)


def _fused_vmem_gather_kernel(uid_ref, iid_ref, u_tab_ref, i_tab_ref,
                              u_out_ref, i_out_ref, *, rows_per_step):
    """Tables fully resident in VMEM; gather `rows_per_step` rows per step.

    uid_ref / iid_ref are the SMEM scalar-prefetch refs holding the id
    vectors; u_tab_ref / i_tab_ref are the whole tables (fetched once thanks
    to the constant index_map); outputs are (rows_per_step, emb) tiles.
    """
    base = pl.program_id(0) * rows_per_step
    for r in range(rows_per_step):          # small static unroll (8 rows)
        uid = uid_ref[base + r]
        iid = iid_ref[base + r]
        u_out_ref[pl.ds(r, 1), :] = u_tab_ref[pl.ds(uid, 1), :]
        i_out_ref[pl.ds(r, 1), :] = i_tab_ref[pl.ds(iid, 1), :]


def _fused_row_gather_kernel(uid_ref, iid_ref, u_row_ref, i_row_ref,
                             u_out_ref, i_out_ref):
    """Fallback for large tables: per-row HBM gather via BlockSpec index_maps."""
    del uid_ref, iid_ref
    u_out_ref[...] = u_row_ref[...]
    i_out_ref[...] = i_row_ref[...]


def fused_embedding_lookup(user_table, item_table, user_id, item_id,
                           use_vmem_tables=None):
    """Returns (user_table[user_id], item_table[item_id]) via one pallas_call."""
    batch = user_id.shape[0]
    num_users, emb_u = user_table.shape
    num_items, emb_i = item_table.shape

    # Defensive clamp: an OOB id would otherwise read an invalid table row.
    uid = jnp.clip(user_id.astype(jnp.int32), 0, num_users - 1)
    iid = jnp.clip(item_id.astype(jnp.int32), 0, num_items - 1)

    table_bytes = (user_table.size * user_table.dtype.itemsize
                   + item_table.size * item_table.dtype.itemsize)
    if use_vmem_tables is None:
        use_vmem_tables = table_bytes <= _VMEM_TABLE_BYTES_LIMIT

    if use_vmem_tables:
        block = _ROWS_PER_STEP
        padded = pl.cdiv(batch, block) * block
        if padded != batch:
            uid = jnp.pad(uid, (0, padded - batch))   # pad with valid row 0
            iid = jnp.pad(iid, (0, padded - batch))

        kernel = functools.partial(_fused_vmem_gather_kernel,
                                   rows_per_step=block)
        u_out, i_out = pl.pallas_call(
            kernel,
            out_shape=(
                jax.ShapeDtypeStruct((padded, emb_u), user_table.dtype),
                jax.ShapeDtypeStruct((padded, emb_i), item_table.dtype),
            ),
            grid_spec=pltpu.PrefetchScalarGridSpec(
                num_scalar_prefetch=2,
                grid=(padded // block,),
                in_specs=[
                    # Whole table as one block; constant index -> fetched once.
                    pl.BlockSpec((num_users, emb_u), lambda i, u, it: (0, 0)),
                    pl.BlockSpec((num_items, emb_i), lambda i, u, it: (0, 0)),
                ],
                out_specs=[
                    pl.BlockSpec((block, emb_u), lambda i, u, it: (i, 0)),
                    pl.BlockSpec((block, emb_i), lambda i, u, it: (i, 0)),
                ],
            ),
            compiler_params=pltpu.CompilerParams(
                dimension_semantics=("parallel",)),   # shard batch across TCs
        )(uid, iid, user_table, item_table)
        return u_out[:batch], i_out[:batch]

    # Fallback: tables too big for VMEM -> fused per-row HBM row-gather.
    u_out, i_out = pl.pallas_call(
        _fused_row_gather_kernel,
        out_shape=(
            jax.ShapeDtypeStruct((batch, emb_u), user_table.dtype),
            jax.ShapeDtypeStruct((batch, emb_i), item_table.dtype),
        ),
        grid_spec=pltpu.PrefetchScalarGridSpec(
            num_scalar_prefetch=2,
            grid=(batch,),
            in_specs=[
                pl.BlockSpec((1, emb_u), lambda i, u, it: (u[i], 0)),
                pl.BlockSpec((1, emb_i), lambda i, u, it: (it[i], 0)),
            ],
            out_specs=[
                pl.BlockSpec((1, emb_u), lambda i, u, it: (i, 0)),
                pl.BlockSpec((1, emb_i), lambda i, u, it: (i, 0)),
            ],
        ),
        compiler_params=pltpu.CompilerParams(
            dimension_semantics=("parallel",)),
    )(uid, iid, user_table, item_table)
    return u_out, i_out


class MFEncoderPallas:
    """JAX/Pallas equivalent of MFEncoder(user_num, item_num, emb_size)."""

    def __init__(self, user_num, item_num, emb_size, key):
        ku, ki = jax.random.split(key)
        # nn.Embedding default init: weight ~ N(0, 1), float32.
        self.user_embedding = jax.random.normal(
            ku, (user_num, emb_size), jnp.float32)
        self.item_embedding = jax.random.normal(
            ki, (item_num, emb_size), jnp.float32)

    def forward(self, user_id, item_id):
        return fused_embedding_lookup(
            self.user_embedding, self.item_embedding, user_id, item_id)

    def get_all_embeddings(self):
        return self.user_embedding, self.item_embedding


if __name__ == "__main__":
    user_num, item_num, emb_size, batch = 64, 100, 32, 8

    enc = MFEncoderPallas(user_num, item_num, emb_size, jax.random.PRNGKey(0))

    k1, k2 = jax.random.split(jax.random.PRNGKey(1))
    user_id = jax.random.randint(k1, (batch,), 0, user_num, dtype=jnp.int32)
    item_id = jax.random.randint(k2, (batch,), 0, item_num, dtype=jnp.int32)

    # Primary path: fused call, tables resident in VMEM.
    u_embed, i_embed = enc.forward(user_id, item_id)
    jax.block_until_ready((u_embed, i_embed))
    assert u_embed.shape == (batch, emb_size) and u_embed.dtype == jnp.float32
    assert i_embed.shape == (batch, emb_size) and i_embed.dtype == jnp.float32
    assert jnp.array_equal(u_embed, enc.user_embedding[user_id])
    assert jnp.array_equal(i_embed, enc.item_embedding[item_id])

    # Fallback path (used when tables exceed the VMEM budget) — forced here
    # so it is exercised too.
    u2, i2 = fused_embedding_lookup(enc.user_embedding, enc.item_embedding,
                                    user_id, item_id, use_vmem_tables=False)
    jax.block_until_ready((u2, i2))
    assert jnp.array_equal(u2, enc.user_embedding[user_id])
    assert jnp.array_equal(i2, enc.item_embedding[item_id])

    # Batch not a multiple of 8 exercises the padding path.
    u3, i3 = fused_embedding_lookup(enc.user_embedding, enc.item_embedding,
                                    user_id[:5], item_id[:5])
    jax.block_until_ready((u3, i3))
    assert u3.shape == (5, emb_size)
    assert jnp.array_equal(u3, enc.user_embedding[user_id[:5]])
    assert jnp.array_equal(i3, enc.item_embedding[item_id[:5]])

    print("KERNEL_OK")
</pallas_src>

<mosaic_0001>
module attributes {stable_mosaic.version = 11 : i64} {
  func.func @_fused_vmem_gather_kernel(%arg0: i32, %arg1: memref<8xi32, #tpu.memory_space<smem>>, %arg2: memref<8xi32, #tpu.memory_space<smem>>, %arg3: memref<64x32xf32, #tpu.memory_space<vmem>>, %arg4: memref<100x32xf32, #tpu.memory_space<vmem>>, %arg5: memref<8x32xf32, #tpu.memory_space<vmem>>, %arg6: memref<8x32xf32, #tpu.memory_space<vmem>>) attributes {dimension_semantics = [#tpu.dimension_semantics<parallel>], iteration_bounds = array<i64: 1>, scalar_prefetch = 2 : i64, scratch_operands = 0 : i64, tpu.core_type = #tpu.core_type<tc>, window_params = [{pipeline_mode = #tpu.pipeline_mode<synchronous>, transform_indices = @transform_0, window_bounds = array<i64: 64, 32>}, {pipeline_mode = #tpu.pipeline_mode<synchronous>, transform_indices = @transform_1, window_bounds = array<i64: 100, 32>}, {transform_indices = @transform_2, window_bounds = array<i64: 8, 32>}, {transform_indices = @transform_3, window_bounds = array<i64: 8, 32>}]} {
    %c8_i32 = arith.constant 8 : i32
    %0 = arith.muli %arg0, %c8_i32 : i32
    %c0_i32 = arith.constant 0 : i32
    %1 = arith.addi %0, %c0_i32 : i32
    %2 = arith.index_cast %1 : i32 to index
    %3 = memref.load %arg1[%2] : memref<8xi32, #tpu.memory_space<smem>>
    %c0_i32_0 = arith.constant 0 : i32
    %4 = arith.addi %0, %c0_i32_0 : i32
    %5 = arith.index_cast %4 : i32 to index
    %6 = memref.load %arg2[%5] : memref<8xi32, #tpu.memory_space<smem>>
    %7 = arith.index_cast %3 : i32 to index
    %c0 = arith.constant 0 : index
    %8 = vector.load %arg3[%7, %c0] : memref<64x32xf32, #tpu.memory_space<vmem>>, vector<1x32xf32>
    %c0_1 = arith.constant 0 : index
    %c0_2 = arith.constant 0 : index
    %9 = vector.load %arg5[%c0_1, %c0_2] : memref<8x32xf32, #tpu.memory_space<vmem>>, vector<1x32xf32>
    tpu.vector_store %arg5[%c0_1, %c0_2], %8 {strides = array<i32>} : memref<8x32xf32, #tpu.memory_space<vmem>>, vector<1x32xf32>,
    %10 = arith.index_cast %6 : i32 to index
    %c0_3 = arith.constant 0 : index
    %11 = vector.load %arg4[%10, %c0_3] : memref<100x32xf32, #tpu.memory_space<vmem>>, vector<1x32xf32>
    %c0_4 = arith.constant 0 : index
    %c0_5 = arith.constant 0 : index
    %12 = vector.load %arg6[%c0_4, %c0_5] : memref<8x32xf32, #tpu.memory_space<vmem>>, vector<1x32xf32>
    tpu.vector_store %arg6[%c0_4, %c0_5], %11 {strides = array<i32>} : memref<8x32xf32, #tpu.memory_space<vmem>>, vector<1x32xf32>,
    %c1_i32 = arith.constant 1 : i32
    %13 = arith.addi %0, %c1_i32 : i32
    %14 = arith.index_cast %13 : i32 to index
    %15 = memref.load %arg1[%14] : memref<8xi32, #tpu.memory_space<smem>>
    %c1_i32_6 = arith.constant 1 : i32
    %16 = arith.addi %0, %c1_i32_6 : i32
    %17 = arith.index_cast %16 : i32 to index
    %18 = memref.load %arg2[%17] : memref<8xi32, #tpu.memory_space<smem>>
    %19 = arith.index_cast %15 : i32 to index
    %c0_7 = arith.constant 0 : index
    %20 = vector.load %arg3[%19, %c0_7] : memref<64x32xf32, #tpu.memory_space<vmem>>, vector<1x32xf32>
    %c1 = arith.constant 1 : index
    %c0_8 = arith.constant 0 : index
    %21 = vector.load %arg5[%c1, %c0_8] : memref<8x32xf32, #tpu.memory_space<vmem>>, vector<1x32xf32>
    tpu.vector_store %arg5[%c1, %c0_8], %20 {strides = array<i32>} : memref<8x32xf32, #tpu.memory_space<vmem>>, vector<1x32xf32>,
    %22 = arith.index_cast %18 : i32 to index
    %c0_9 = arith.constant 0 : index
    %23 = vector.load %arg4[%22, %c0_9] : memref<100x32xf32, #tpu.memory_space<vmem>>, vector<1x32xf32>
    %c1_10 = arith.constant 1 : index
    %c0_11 = arith.constant 0 : index
    %24 = vector.load %arg6[%c1_10, %c0_11] : memref<8x32xf32, #tpu.memory_space<vmem>>, vector<1x32xf32>
    tpu.vector_store %arg6[%c1_10, %c0_11], %23 {strides = array<i32>} : memref<8x32xf32, #tpu.memory_space<vmem>>, vector<1x32xf32>,
    %c2_i32 = arith.constant 2 : i32
    %25 = arith.addi %0, %c2_i32 : i32
    %26 = arith.index_cast %25 : i32 to index
    %27 = memref.load %arg1[%26] : memref<8xi32, #tpu.memory_space<smem>>
    %c2_i32_12 = arith.constant 2 : i32
    %28 = arith.addi %0, %c2_i32_12 : i32
    %29 = arith.index_cast %28 : i32 to index
    %30 = memref.load %arg2[%29] : memref<8xi32, #tpu.memory_space<smem>>
    %31 = arith.index_cast %27 : i32 to index
    %c0_13 = arith.constant 0 : index
    %32 = vector.load %arg3[%31, %c0_13] : memref<64x32xf32, #tpu.memory_space<vmem>>, vector<1x32xf32>
    %c2 = arith.constant 2 : index
    %c0_14 = arith.constant 0 : index
    %33 = vector.load %arg5[%c2, %c0_14] : memref<8x32xf32, #tpu.memory_space<vmem>>, vector<1x32xf32>
    tpu.vector_store %arg5[%c2, %c0_14], %32 {strides = array<i32>} : memref<8x32xf32, #tpu.memory_space<vmem>>, vector<1x32xf32>,
    %34 = arith.index_cast %30 : i32 to index
    %c0_15 = arith.constant 0 : index
    %35 = vector.load %arg4[%34, %c0_15] : memref<100x32xf32, #tpu.memory_space<vmem>>, vector<1x32xf32>
    %c2_16 = arith.constant 2 : index
    %c0_17 = arith.constant 0 : index
    %36 = vector.load %arg6[%c2_16, %c0_17] : memref<8x32xf32, #tpu.memory_space<vmem>>, vector<1x32xf32>
    tpu.vector_store %arg6[%c2_16, %c0_17], %35 {strides = array<i32>} : memref<8x32xf32, #tpu.memory_space<vmem>>, vector<1x32xf32>,
    %c3_i32 = arith.constant 3 : i32
    %37 = arith.addi %0, %c3_i32 : i32
    %38 = arith.index_cast %37 : i32 to index
    %39 = memref.load %arg1[%38] : memref<8xi32, #tpu.memory_space<smem>>
    %c3_i32_18 = arith.constant 3 : i32
    %40 = arith.addi %0, %c3_i32_18 : i32
    %41 = arith.index_cast %40 : i32 to index
    %42 = memref.load %arg2[%41] : memref<8xi32, #tpu.memory_space<smem>>
    %43 = arith.index_cast %39 : i32 to index
    %c0_19 = arith.constant 0 : index
    %44 = vector.load %arg3[%43, %c0_19] : memref<64x32xf32, #tpu.memory_space<vmem>>, vector<1x32xf32>
    %c3 = arith.constant 3 : index
    %c0_20 = arith.constant 0 : index
    %45 = vector.load %arg5[%c3, %c0_20] : memref<8x32xf32, #tpu.memory_space<vmem>>, vector<1x32xf32>
    tpu.vector_store %arg5[%c3, %c0_20], %44 {strides = array<i32>} : memref<8x32xf32, #tpu.memory_space<vmem>>, vector<1x32xf32>,
    %46 = arith.index_cast %42 : i32 to index
    %c0_21 = arith.constant 0 : index
    %47 = vector.load %arg4[%46, %c0_21] : memref<100x32xf32, #tpu.memory_space<vmem>>, vector<1x32xf32>
    %c3_22 = arith.constant 3 : index
    %c0_23 = arith.constant 0 : index
    %48 = vector.load %arg6[%c3_22, %c0_23] : memref<8x32xf32, #tpu.memory_space<vmem>>, vector<1x32xf32>
    tpu.vector_store %arg6[%c3_22, %c0_23], %47 {strides = array<i32>} : memref<8x32xf32, #tpu.memory_space<vmem>>, vector<1x32xf32>,
    %c4_i32 = arith.constant 4 : i32
    %49 = arith.addi %0, %c4_i32 : i32
    %50 = arith.index_cast %49 : i32 to index
    %51 = memref.load %arg1[%50] : memref<8xi32, #tpu.memory_space<smem>>
    %c4_i32_24 = arith.constant 4 : i32
    %52 = arith.addi %0, %c4_i32_24 : i32
    %53 = arith.index_cast %52 : i32 to index
    %54 = memref.load %arg2[%53] : memref<8xi32, #tpu.memory_space<smem>>
    %55 = arith.index_cast %51 : i32 to index
    %c0_25 = arith.constant 0 : index
    %56 = vector.load %arg3[%55, %c0_25] : memref<64x32xf32, #tpu.memory_space<vmem>>, vector<1x32xf32>
    %c4 = arith.constant 4 : index
    %c0_26 = arith.constant 0 : index
    %57 = vector.load %arg5[%c4, %c0_26] : memref<8x32xf32, #tpu.memory_space<vmem>>, vector<1x32xf32>
    tpu.vector_store %arg5[%c4, %c0_26], %56 {strides = array<i32>} : memref<8x32xf32, #tpu.memory_space<vmem>>, vector<1x32xf32>,
    %58 = arith.index_cast %54 : i32 to index
    %c0_27 = arith.constant 0 : index
    %59 = vector.load %arg4[%58, %c0_27] : memref<100x32xf32, #tpu.memory_space<vmem>>, vector<1x32xf32>
    %c4_28 = arith.constant 4 : index
    %c0_29 = arith.constant 0 : index
    %60 = vector.load %arg6[%c4_28, %c0_29] : memref<8x32xf32, #tpu.memory_space<vmem>>, vector<1x32xf32>
    tpu.vector_store %arg6[%c4_28, %c0_29], %59 {strides = array<i32>} : memref<8x32xf32, #tpu.memory_space<vmem>>, vector<1x32xf32>,
    %c5_i32 = arith.constant 5 : i32
    %61 = arith.addi %0, %c5_i32 : i32
    %62 = arith.index_cast %61 : i32 to index
    %63 = memref.load %arg1[%62] : memref<8xi32, #tpu.memory_space<smem>>
    %c5_i32_30 = arith.constant 5 : i32
    %64 = arith.addi %0, %c5_i32_30 : i32
    %65 = arith.index_cast %64 : i32 to index
    %66 = memref.load %arg2[%65] : memref<8xi32, #tpu.memory_space<smem>>
    %67 = arith.index_cast %63 : i32 to index
    %c0_31 = arith.constant 0 : index
    %68 = vector.load %arg3[%67, %c0_31] : memref<64x32xf32, #tpu.memory_space<vmem>>, vector<1x32xf32>
    %c5 = arith.constant 5 : index
    %c0_32 = arith.constant 0 : index
    %69 = vector.load %arg5[%c5, %c0_32] : memref<8x32xf32, #tpu.memory_space<vmem>>, vector<1x32xf32>
    tpu.vector_store %arg5[%c5, %c0_32], %68 {strides = array<i32>} : memref<8x32xf32, #tpu.memory_space<vmem>>, vector<1x32xf32>,
    %70 = arith.index_cast %66 : i32 to index
    %c0_33 = arith.constant 0 : index
    %71 = vector.load %arg4[%70, %c0_33] : memref<100x32xf32, #tpu.memory_space<vmem>>, vector<1x32xf32>
    %c5_34 = arith.constant 5 : index
    %c0_35 = arith.constant 0 : index
    %72 = vector.load %arg6[%c5_34, %c0_35] : memref<8x32xf32, #tpu.memory_space<vmem>>, vector<1x32xf32>
    tpu.vector_store %arg6[%c5_34, %c0_35], %71 {strides = array<i32>} : memref<8x32xf32, #tpu.memory_space<vmem>>, vector<1x32xf32>,
    %c6_i32 = arith.constant 6 : i32
    %73 = arith.addi %0, %c6_i32 : i32
    %74 = arith.index_cast %73 : i32 to index
    %75 = memref.load %arg1[%74] : memref<8xi32, #tpu.memory_space<smem>>
    %c6_i32_36 = arith.constant 6 : i32
    %76 = arith.addi %0, %c6_i32_36 : i32
    %77 = arith.index_cast %76 : i32 to index
    %78 = memref.load %arg2[%77] : memref<8xi32, #tpu.memory_space<smem>>
    %79 = arith.index_cast %75 : i32 to index
    %c0_37 = arith.constant 0 : index
    %80 = vector.load %arg3[%79, %c0_37] : memref<64x32xf32, #tpu.memory_space<vmem>>, vector<1x32xf32>
    %c6 = arith.constant 6 : index
    %c0_38 = arith.constant 0 : index
    %81 = vector.load %arg5[%c6, %c0_38] : memref<8x32xf32, #tpu.memory_space<vmem>>, vector<1x32xf32>
    tpu.vector_store %arg5[%c6, %c0_38], %80 {strides = array<i32>} : memref<8x32xf32, #tpu.memory_space<vmem>>, vector<1x32xf32>,
    %82 = arith.index_cast %78 : i32 to index
    %c0_39 = arith.constant 0 : index
    %83 = vector.load %arg4[%82, %c0_39] : memref<100x32xf32, #tpu.memory_space<vmem>>, vector<1x32xf32>
    %c6_40 = arith.constant 6 : index
    %c0_41 = arith.constant 0 : index
    %84 = vector.load %arg6[%c6_40, %c0_41] : memref<8x32xf32, #tpu.memory_space<vmem>>, vector<1x32xf32>
    tpu.vector_store %arg6[%c6_40, %c0_41], %83 {strides = array<i32>} : memref<8x32xf32, #tpu.memory_space<vmem>>, vector<1x32xf32>,
    %c7_i32 = arith.constant 7 : i32
    %85 = arith.addi %0, %c7_i32 : i32
    %86 = arith.index_cast %85 : i32 to index
    %87 = memref.load %arg1[%86] : memref<8xi32, #tpu.memory_space<smem>>
    %c7_i32_42 = arith.constant 7 : i32
    %88 = arith.addi %0, %c7_i32_42 : i32
    %89 = arith.index_cast %88 : i32 to index
    %90 = memref.load %arg2[%89] : memref<8xi32, #tpu.memory_space<smem>>
    %91 = arith.index_cast %87 : i32 to index
    %c0_43 = arith.constant 0 : index
    %92 = vector.load %arg3[%91, %c0_43] : memref<64x32xf32, #tpu.memory_space<vmem>>, vector<1x32xf32>
    %c7 = arith.constant 7 : index
    %c0_44 = arith.constant 0 : index
    %93 = vector.load %arg5[%c7, %c0_44] : memref<8x32xf32, #tpu.memory_space<vmem>>, vector<1x32xf32>
    tpu.vector_store %arg5[%c7, %c0_44], %92 {strides = array<i32>} : memref<8x32xf32, #tpu.memory_space<vmem>>, vector<1x32xf32>,
    %94 = arith.index_cast %90 : i32 to index
    %c0_45 = arith.constant 0 : index
    %95 = vector.load %arg4[%94, %c0_45] : memref<100x32xf32, #tpu.memory_space<vmem>>, vector<1x32xf32>
    %c7_46 = arith.constant 7 : index
    %c0_47 = arith.constant 0 : index
    %96 = vector.load %arg6[%c7_46, %c0_47] : memref<8x32xf32, #tpu.memory_space<vmem>>, vector<1x32xf32>
    tpu.vector_store %arg6[%c7_46, %c0_47], %95 {strides = array<i32>} : memref<8x32xf32, #tpu.memory_space<vmem>>, vector<1x32xf32>,
    return
  }
  func.func @transform_0(%arg0: i32, %arg1: memref<8xi32, #tpu.memory_space<smem>>, %arg2: memref<8xi32, #tpu.memory_space<smem>>) -> (i32, i32) {
    %c0_i32 = arith.constant 0 : i32
    %c0_i32_0 = arith.constant 0 : i32
    %c0_i32_1 = arith.constant 0 : i32
    return %c0_i32, %c0_i32_0 : i32, i32
  }
  func.func @transform_1(%arg0: i32, %arg1: memref<8xi32, #tpu.memory_space<smem>>, %arg2: memref<8xi32, #tpu.memory_space<smem>>) -> (i32, i32) {
    %c0_i32 = arith.constant 0 : i32
    %c0_i32_0 = arith.constant 0 : i32
    %c0_i32_1 = arith.constant 0 : i32
    return %c0_i32, %c0_i32_0 : i32, i32
  }
  func.func @transform_2(%arg0: i32, %arg1: memref<8xi32, #tpu.memory_space<smem>>, %arg2: memref<8xi32, #tpu.memory_space<smem>>) -> (i32, i32) {
    %c0_i32 = arith.constant 0 : i32
    %c0_i32_0 = arith.constant 0 : i32
    return %arg0, %c0_i32 : i32, i32
  }
  func.func @transform_3(%arg0: i32, %arg1: memref<8xi32, #tpu.memory_space<smem>>, %arg2: memref<8xi32, #tpu.memory_space<smem>>) -> (i32, i32) {
    %c0_i32 = arith.constant 0 : i32
    %c0_i32_0 = arith.constant 0 : i32
    return %arg0, %c0_i32 : i32, i32
  }
}

</mosaic_0001>

<llo_original>
// kernel: tpu_custom_call.1
$region0: #{tpu_custom_call.1}
  #allocation0 [shape = 'u32[]', space=smem, size = 0x4, offset = 0x4, fixed_abs, tag = 'smem constant byte address 0x4 - core index']
  #allocation1 [shape = 'u32[144,128]{1,0:T(1,128)}', space=vmem, size = 0x12000, scoped, tag = 'internal scratch']
  #allocation2 [shape = 's32[1]{0}', space=sflag, size = 0x4, scoped, tag = 'scoped memory for tpu_custom_call.1']
  #allocation3 [shape = 'u8[512]{0}', space=smem, size = 0x200, scoped, tag = 'prefetched SMEM operand 0']
  #allocation4 [shape = 'u8[512]{0}', space=smem, size = 0x200, scoped, tag = 'prefetched SMEM operand 1']
  %s0 = inlined_call_operand.vmem [shape: s32[8], index: 0, kind: input, shape index: {}]
  %s1 = inlined_call_operand.vmem [shape: s32[8], index: 1, kind: input, shape index: {}]
  %s2 = inlined_call_operand.vmem [shape: f32[64,32], index: 2, kind: input, shape index: {}]
  %s3 = inlined_call_operand.vmem [shape: f32[100,32], index: 3, kind: input, shape index: {}]
  %s4 = inlined_call_operand.hbm [shape: f32[8,32], index: 4, kind: output, shape index: {0}]
  %s5 = inlined_call_operand.hbm [shape: f32[8,32], index: 5, kind: output, shape index: {1}]
  %6 = xla_tuple %s4, %s5
  %s7 = sld [smem:[#allocation0]]
  $region26: #{tpu_custom_call.1} parent=0
    _
  %s9 = ssub.s32 1, %s7
  %s10 = scalar_select 0, %s9, %s7
  %s11 = sshll.u32 %s0, 4
  %s12 = int_to_ptr.vmem [resolvable:$true] %s11
  %14 = dma.vmem_to_smem %s12, 16, [#allocation3], [#allocation2]
  %s15 = sshll.u32 %s1, 4
  %s16 = int_to_ptr.vmem [resolvable:$true] %s15
  %18 = dma.vmem_to_smem %s16, 16, [#allocation4], [#allocation2]
  %19 = dma.done [#allocation2], 32
  %20 = sfence
  $region1: #{tpu_custom_call.1} parent=0
    #allocation5 [shape = 'u8[4096]{0}', space=vmem, size = 0x1000, scoped, tag = 'output window, operand 0, single buffered']
    #allocation6 [shape = 's32[1]{0}', space=sflag, size = 0x4, scoped, tag = 'scoped memory for tpu_custom_call.1']
    #allocation7 [shape = 'u8[4096]{0}', space=vmem, size = 0x1000, scoped, tag = 'output window, operand 1, single buffered']
    #allocation8 [shape = 's32[1]{0}', space=sflag, size = 0x4, scoped, tag = 'scoped memory for tpu_custom_call.1']
    %21 = vsyncpa [#allocation6], 0
    %22 = vsyncpa [#allocation8], 0
    // Predicated region
    $region2: #{tpu_custom_call.1} parent=1 // pred_check
      _
    $region3: #{tpu_custom_call.1} parent=1 // pred_check_branch
      %24 = sbr.rel (0) target = $region5
    $region4: #{tpu_custom_call.1} parent=1 // pred_region
      _
    $region5: #{tpu_custom_call.1} parent=1 // pred_fallthru
      _
    // Predicated region
    $region6: #{tpu_custom_call.1} parent=1 // pred_check
      _
    $region7: #{tpu_custom_call.1} parent=1 // pred_check_branch
      %26 = sbr.rel (0) target = $region9
    $region8: #{tpu_custom_call.1} parent=1 // pred_region
      _
    $region9: #{tpu_custom_call.1} parent=1 // pred_fallthru
      _
    %s27 = smul.u32 0, 8
    %s28 = sld [smem:[#allocation3 + %s27]]
    %s29 = sld [smem:[#allocation4 + %s27]]
    %s30 = scalar_lea.vmem %s2, %s28
    %v31 = vld [vmem:[%s30] sm:$0x1]
    %vm32 = vcmask 253952
    %33 = vst.msk [vmem:[#allocation5] sm:$0x1] %vm32, %v31
    %s34 = scalar_lea.vmem %s3, %s29
    %v35 = vld [vmem:[%s34] sm:$0x1]
    %36 = vst.msk [vmem:[#allocation7] sm:$0x1] %vm32, %v35
    %s37 = sadd.s32 %s27, 1
    %s38 = sld [smem:[#allocation3 + %s37]]
    %s39 = sld [smem:[#allocation4 + %s37]]
    %s40 = scalar_lea.vmem %s2, %s38
    %v41 = vld [vmem:[%s40] sm:$0x1]
    %42 = vst.msk [vmem:[#allocation5 + $0x1] sm:$0x1] %vm32, %v41
    %s43 = scalar_lea.vmem %s3, %s39
    %v44 = vld [vmem:[%s43] sm:$0x1]
    %45 = vst.msk [vmem:[#allocation7 + $0x1] sm:$0x1] %vm32, %v44
    %s46 = sadd.s32 %s27, 2
    %s47 = sld [smem:[#allocation3 + %s46]]
    %s48 = sld [smem:[#allocation4 + %s46]]
    %s49 = scalar_lea.vmem %s2, %s47
    %v50 = vld [vmem:[%s49] sm:$0x1]
    %51 = vst.msk [vmem:[#allocation5 + $0x2] sm:$0x1] %vm32, %v50
    %s52 = scalar_lea.vmem %s3, %s48
    %v53 = vld [vmem:[%s52] sm:$0x1]
    %54 = vst.msk [vmem:[#allocation7 + $0x2] sm:$0x1] %vm32, %v53
    %s55 = sadd.s32 %s27, 3
    %s56 = sld [smem:[#allocation3 + %s55]]
    %s57 = sld [smem:[#allocation4 + %s55]]
    %s58 = scalar_lea.vmem %s2, %s56
    %v59 = vld [vmem:[%s58] sm:$0x1]
    %60 = vst.msk [vmem:[#allocation5 + $0x3] sm:$0x1] %vm32, %v59
    %s61 = scalar_lea.vmem %s3, %s57
    %v62 = vld [vmem:[%s61] sm:$0x1]
    %63 = vst.msk [vmem:[#allocation7 + $0x3] sm:$0x1] %vm32, %v62
    %s64 = sadd.s32 %s27, 4
    %s65 = sld [smem:[#allocation3 + %s64]]
    %s66 = sld [smem:[#allocation4 + %s64]]
    %s67 = scalar_lea.vmem %s2, %s65
    %v68 = vld [vmem:[%s67] sm:$0x1]
    %69 = vst.msk [vmem:[#allocation5 + $0x4] sm:$0x1] %vm32, %v68
    %s70 = scalar_lea.vmem %s3, %s66
    %v71 = vld [vmem:[%s70] sm:$0x1]
    %72 = vst.msk [vmem:[#allocation7 + $0x4] sm:$0x1] %vm32, %v71
    %s73 = sadd.s32 %s27, 5
    %s74 = sld [smem:[#allocation3 + %s73]]
    %s75 = sld [smem:[#allocation4 + %s73]]
    %s76 = scalar_lea.vmem %s2, %s74
    %v77 = vld [vmem:[%s76] sm:$0x1]
    %78 = vst.msk [vmem:[#allocation5 + $0x5] sm:$0x1] %vm32, %v77
    %s79 = scalar_lea.vmem %s3, %s75
    %v80 = vld [vmem:[%s79] sm:$0x1]
    %81 = vst.msk [vmem:[#allocation7 + $0x5] sm:$0x1] %vm32, %v80
    %s82 = sadd.s32 %s27, 6
    %s83 = sld [smem:[#allocation3 + %s82]]
    %s84 = sld [smem:[#allocation4 + %s82]]
    %s85 = scalar_lea.vmem %s2, %s83
    %v86 = vld [vmem:[%s85] sm:$0x1]
    %87 = vst.msk [vmem:[#allocation5 + $0x6] sm:$0x1] %vm32, %v86
    %s88 = scalar_lea.vmem %s3, %s84
    %v89 = vld [vmem:[%s88] sm:$0x1]
    %90 = vst.msk [vmem:[#allocation7 + $0x6] sm:$0x1] %vm32, %v89
    %s91 = sadd.s32 %s27, 7
    %s92 = sld [smem:[#allocation3 + %s91]]
    %s93 = sld [smem:[#allocation4 + %s91]]
    %s94 = scalar_lea.vmem %s2, %s92
    %v95 = vld [vmem:[%s94] sm:$0x1]
    %96 = vst.msk [vmem:[#allocation5 + $0x7] sm:$0x1] %vm32, %v95
    %s97 = scalar_lea.vmem %s3, %s93
    %v98 = vld [vmem:[%s97] sm:$0x1]
    %99 = vst.msk [vmem:[#allocation7 + $0x7] sm:$0x1] %vm32, %v98
    // Predicated region
    $region10: #{tpu_custom_call.1} parent=1 // pred_check
      _
    $region11: #{tpu_custom_call.1} parent=1 // pred_check_branch
      %101 = sbr.rel (0) target = $region13
    $region12: #{tpu_custom_call.1} parent=1 // pred_region
      %s103 = ssub.s32 128, 128
      %104 = vsyncadd [#allocation6], %s103
      %s106 = sshll.u32 [#allocation5], 4
      %s107 = int_to_ptr.vmem [resolvable:$true] %s106
      %109 = dma.vmem_to_hbm [thread:$0]  %s107, 128, %s4, [#allocation6]
    $region13: #{tpu_custom_call.1} parent=1 // pred_fallthru
      _
    // Predicated region
    $region14: #{tpu_custom_call.1} parent=1 // pred_check
      _
    $region15: #{tpu_custom_call.1} parent=1 // pred_check_branch
      %111 = sbr.rel (0) target = $region17
    $region16: #{tpu_custom_call.1} parent=1 // pred_region
      %s113 = ssub.s32 128, 128
      %114 = vsyncadd [#allocation8], %s113
      %s116 = sshll.u32 [#allocation7], 4
      %s117 = int_to_ptr.vmem [resolvable:$true] %s116
      %119 = dma.vmem_to_hbm [thread:$0]  %s117, 128, %s5, [#allocation8]
    $region17: #{tpu_custom_call.1} parent=1 // pred_fallthru
      _
    // Predicated region
    $region18: #{tpu_custom_call.1} parent=1 // pred_check
      _
    $region19: #{tpu_custom_call.1} parent=1 // pred_check_branch
      %121 = sbr.rel (0) target = $region21
    $region20: #{tpu_custom_call.1} parent=1 // pred_region
      %122 = dma.done [#allocation6], 128
    $region21: #{tpu_custom_call.1} parent=1 // pred_fallthru
      _
    // Predicated region
    $region22: #{tpu_custom_call.1} parent=1 // pred_check
      _
    $region23: #{tpu_custom_call.1} parent=1 // pred_check_branch
      %124 = sbr.rel (0) target = $region25
    $region24: #{tpu_custom_call.1} parent=1 // pred_region
      %125 = dma.done [#allocation8], 128
    $region25: #{tpu_custom_call.1} parent=1 // pred_fallthru
      _
    %126 = vsyncpa [#allocation6], 1
    %127 = vsyncpa [#allocation8], 1

</llo_original>
